<compile_context>
chip_gen: v6e
topology: v6e:2x2x1
jax: 0.10.0
libtpu: 0.0.40
codegen_flags: <defaults>
</compile_context>

<pallas_src>
import jax
import jax.numpy as jnp
from jax import lax
from jax.experimental import pallas as pl
from jax.experimental.pallas import tpu as pltpu

_LANES = 1024                            # slab width: lane-dense, multiple of 128
_TARGET_BLOCK_BYTES = 4 * 1024 * 1024    # ~4 MiB per block
_LN2 = 0.6931471805599453


def _asinh_kernel(x_ref, o_ref):
    """Elementwise asinh on one (block_rows, _LANES) tile, f32 internal math.

    |x| <= 2^31 : asinh(|x|) = log1p(|x| + |x|^2 / (1 + sqrt(|x|^2 + 1)))
    |x| >  2^31 : asinh(|x|) = log(2|x|) = log1p(|x|/2 - 1) + 2*ln2
                  (avoids |x|^2 overflow; approximation error ~1/(4x^2))
    The divide is implemented as EUP approx reciprocal + one Newton step
    (error ~delta^2 -> well below f32 eps), so the VPU never runs a
    full-precision divide refinement sequence.
    """
    xf = x_ref[...].astype(jnp.float32)
    ax = jnp.abs(xf)

    big = ax > jnp.float32(2.0 ** 31)
    sq = ax * ax
    den = 1.0 + jnp.sqrt(sq + 1.0)
    r = pl.reciprocal(den, approx=True)          # EUP slot (nearly free)
    r = r * (2.0 - den * r)                      # one Newton step -> ~f32 exact
    small_arg = ax + sq * r                      # accurate near 0 (log1p form)
    big_arg = 0.5 * ax - 1.0                     # log1p(big_arg) = log(|x|) - ln2
    arg = jnp.where(big, big_arg, small_arg)

    y = jnp.log1p(arg) + jnp.where(big, jnp.float32(2.0 * _LN2), jnp.float32(0.0))

    # copysign(y, x) via a sign-bit OR (y >= 0 by construction; keeps -0.0).
    sign_bits = pltpu.bitcast(xf, jnp.uint32) & jnp.uint32(0x80000000)
    y_signed = pltpu.bitcast(pltpu.bitcast(y, jnp.uint32) | sign_bits, jnp.float32)

    o_ref[...] = y_signed.astype(o_ref.dtype)


def _round_up(v, m):
    return ((v + m - 1) // m) * m


def _pick_block_rows(rows, itemsize, sub):
    """~4 MiB blocks, sublane-aligned, and >= 2 grid blocks for v7x megacore."""
    block_rows = max(sub, (_TARGET_BLOCK_BYTES // (_LANES * itemsize)) // sub * sub)
    block_rows = min(block_rows, _round_up(rows, sub))
    # Guarantee at least 2 blocks (when the array has more than one sublane
    # group of rows) so both v7x TensorCores get work under ("parallel",).
    while block_rows > sub and -(-rows // block_rows) == 1:
        block_rows = max(sub, _round_up((block_rows + 1) // 2, sub))
    # A 3-block grid leaves one v7x core with 2x the work; split once more.
    if block_rows > sub and -(-rows // block_rows) == 3:
        block_rows = max(sub, _round_up((block_rows + 1) // 2, sub))
    return block_rows


def _asinh_slab(x2d):
    """Run the Pallas kernel over a (rows, _LANES) slab."""
    rows, lanes = x2d.shape
    itemsize = jnp.dtype(x2d.dtype).itemsize
    # Sublane granularity: 8 for 4-byte dtypes, 16 for 2-byte, 32 for 1-byte.
    sub = max(8, 32 // itemsize)
    block_rows = _pick_block_rows(rows, itemsize, sub)
    grid = (pl.cdiv(rows, block_rows),)      # ragged last block is masked

    block_bytes = block_rows * lanes * itemsize
    # in + out, double-buffered, plus headroom. 32 MiB covers 4 MiB blocks and
    # stays under the 64 MiB physical VMEM of a v7x TensorCore.
    vmem_limit = min(64 * 1024 * 1024,
                     max(32 * 1024 * 1024, 4 * block_bytes + 8 * 1024 * 1024))

    n_elems = rows * lanes
    cost = pl.CostEstimate(flops=15 * n_elems,
                           transcendentals=3 * n_elems,
                           bytes_accessed=2 * n_elems * itemsize)

    return pl.pallas_call(
        _asinh_kernel,
        out_shape=jax.ShapeDtypeStruct((rows, lanes), x2d.dtype),
        grid_spec=pltpu.PrefetchScalarGridSpec(
            num_scalar_prefetch=0,
            grid=grid,
            in_specs=[pl.BlockSpec((block_rows, lanes), lambda i: (i, 0))],
            out_specs=pl.BlockSpec((block_rows, lanes), lambda i: (i, 0)),
        ),
        compiler_params=pltpu.CompilerParams(
            dimension_semantics=("parallel",),   # megacore-shardable on v7x
            vmem_limit_bytes=vmem_limit,
        ),
        cost_estimate=cost,
    )(x2d)


def _asinh_formula_f32(xf):
    """Pure-JAX mirror of the kernel math (for the <1024-element ragged tail)."""
    ax = jnp.abs(xf)
    big = ax > jnp.float32(2.0 ** 31)
    sq = ax * ax
    small_arg = ax + sq / (1.0 + jnp.sqrt(sq + 1.0))
    big_arg = 0.5 * ax - 1.0
    arg = jnp.where(big, big_arg, small_arg)
    y = jnp.log1p(arg) + jnp.where(big, jnp.float32(2.0 * _LN2), jnp.float32(0.0))
    return jnp.copysign(y, xf)


def asinh_pallas(x):
    """Elementwise asinh via a Pallas TPU kernel. Works for any shape/float dtype."""
    orig_shape = x.shape
    orig_dtype = x.dtype
    flat = x.reshape(-1)
    n = flat.shape[0]

    if n == 0:
        return x            # empty input: nothing to compute

    n_main = (n // _LANES) * _LANES

    if n_main == n:
        # Fully lane-aligned (common NN case): pure reshapes, no pad / slice.
        out2d = _asinh_slab(flat.reshape(n // _LANES, _LANES))
        return out2d.reshape(orig_shape)

    # Ragged tail (< 1024 elements): negligible work, computed with the same
    # formula as the kernel for ULP consistency across the boundary.
    tail = _asinh_formula_f32(flat[n_main:].astype(jnp.float32)).astype(orig_dtype)
    if n_main == 0:
        return tail.reshape(orig_shape)

    prefix = _asinh_slab(flat[:n_main].reshape(n_main // _LANES, _LANES)).reshape(-1)
    # Assemble prefix + tail with dynamic_update_slice instead of
    # jnp.concatenate (avoids an extra full-prefix HBM round trip).
    out = jnp.zeros((n,), orig_dtype)
    out = lax.dynamic_update_slice(out, prefix, (0,))
    out = lax.dynamic_update_slice(out, tail, (n_main,))
    return out.reshape(orig_shape)


if __name__ == "__main__":
    key = jax.random.PRNGKey(0)
    k0, k1 = jax.random.split(key)

    # Small NCHW-style input consistent with the (parameter-free) module.
    x = jax.random.normal(k0, (2, 4, 16, 16), dtype=jnp.float32) * 3.0
    y = asinh_pallas(x)
    jax.block_until_ready(y)
    y_ref = jnp.arcsinh(x)
    assert y.shape == x.shape and y.dtype == x.dtype
    assert float(jnp.max(jnp.abs(y - y_ref))) < 2e-5

    # Ragged (non multiple-of-1024) shape exercises the aligned-prefix + tail path.
    x2 = jax.random.normal(k1, (3, 5, 7, 11), dtype=jnp.float32) * 5.0
    y2 = asinh_pallas(x2)
    jax.block_until_ready(y2)
    assert y2.shape == x2.shape and y2.dtype == x2.dtype
    assert float(jnp.max(jnp.abs(y2 - jnp.arcsinh(x2)))) < 2e-5

    # Empty-input edge case (previously raised IndexError).
    y0 = asinh_pallas(jnp.zeros((0,), jnp.float32))
    assert y0.shape == (0,)

    print("KERNEL_OK")
</pallas_src>

<mosaic_0001>
module attributes {stable_mosaic.version = 11 : i64} {
  func.func @_asinh_kernel(%arg0: i32, %arg1: memref<8x1024xf32, #tpu.memory_space<vmem>>, %arg2: memref<8x1024xf32, #tpu.memory_space<vmem>>) attributes {dimension_semantics = [#tpu.dimension_semantics<parallel>], iteration_bounds = array<i64: 1>, scalar_prefetch = 0 : i64, scratch_operands = 0 : i64, tpu.core_type = #tpu.core_type<tc>, window_params = [{transform_indices = @transform_0, window_bounds = array<i64: 8, 1024>}, {transform_indices = @transform_1, window_bounds = array<i64: 8, 1024>}]} {
    %c0 = arith.constant 0 : index
    %c0_0 = arith.constant 0 : index
    %0 = vector.load %arg1[%c0, %c0_0] : memref<8x1024xf32, #tpu.memory_space<vmem>>, vector<8x1024xf32>
    %1 = math.absf %0 : vector<8x1024xf32>
    %cst = arith.constant 2.14748365E+9 : f32
    %2 = vector.broadcast %cst : f32 to vector<8x1024xf32>
    %3 = arith.cmpf ogt, %1, %2 : vector<8x1024xf32>
    %4 = arith.mulf %1, %1 : vector<8x1024xf32>
    %cst_1 = arith.constant 1.000000e+00 : f32
    %5 = vector.broadcast %cst_1 : f32 to vector<8x1024xf32>
    %6 = arith.addf %4, %5 : vector<8x1024xf32>
    %7 = math.sqrt %6 : vector<8x1024xf32>
    %cst_2 = arith.constant 1.000000e+00 : f32
    %8 = vector.broadcast %cst_2 : f32 to vector<8x1024xf32>
    %9 = arith.addf %8, %7 : vector<8x1024xf32>
    %10 = tpu.reciprocal %9 {approx = true} : vector<8x1024xf32> -> vector<8x1024xf32>
    %11 = arith.mulf %9, %10 : vector<8x1024xf32>
    %cst_3 = arith.constant 2.000000e+00 : f32
    %12 = vector.broadcast %cst_3 : f32 to vector<8x1024xf32>
    %13 = arith.subf %12, %11 : vector<8x1024xf32>
    %14 = arith.mulf %10, %13 : vector<8x1024xf32>
    %15 = arith.mulf %4, %14 : vector<8x1024xf32>
    %16 = arith.addf %1, %15 : vector<8x1024xf32>
    %cst_4 = arith.constant 5.000000e-01 : f32
    %17 = vector.broadcast %cst_4 : f32 to vector<8x1024xf32>
    %18 = arith.mulf %17, %1 : vector<8x1024xf32>
    %cst_5 = arith.constant 1.000000e+00 : f32
    %19 = vector.broadcast %cst_5 : f32 to vector<8x1024xf32>
    %20 = arith.subf %18, %19 : vector<8x1024xf32>
    %21 = arith.select %3, %20, %16 : vector<8x1024xi1>, vector<8x1024xf32>
    %22 = math.log1p %21 : vector<8x1024xf32>
    %cst_6 = arith.constant 1.38629436 : f32
    %cst_7 = arith.constant 0.000000e+00 : f32
    %23 = vector.broadcast %cst_6 : f32 to vector<8x1024xf32>
    %24 = vector.broadcast %cst_7 : f32 to vector<8x1024xf32>
    %25 = arith.select %3, %23, %24 : vector<8x1024xi1>, vector<8x1024xf32>
    %26 = arith.addf %22, %25 : vector<8x1024xf32>
    %27 = tpu.bitcast %0 : vector<8x1024xf32> -> vector<8x1024xi32>
    %c-2147483648_i32 = arith.constant -2147483648 : i32
    %28 = vector.broadcast %c-2147483648_i32 : i32 to vector<8x1024xi32>
    %29 = arith.andi %27, %28 : vector<8x1024xi32>
    %30 = tpu.bitcast %26 : vector<8x1024xf32> -> vector<8x1024xi32>
    %31 = arith.ori %30, %29 : vector<8x1024xi32>
    %32 = tpu.bitcast %31 : vector<8x1024xi32> -> vector<8x1024xf32>
    %c0_8 = arith.constant 0 : index
    %c0_9 = arith.constant 0 : index
    %33 = vector.load %arg2[%c0_8, %c0_9] : memref<8x1024xf32, #tpu.memory_space<vmem>>, vector<8x1024xf32>
    tpu.vector_store %arg2[%c0_8, %c0_9], %32 {strides = array<i32>} : memref<8x1024xf32, #tpu.memory_space<vmem>>, vector<8x1024xf32>,
    return
  }
  func.func @transform_0(%arg0: i32) -> (i32, i32) {
    %c0_i32 = arith.constant 0 : i32
    %c0_i32_0 = arith.constant 0 : i32
    return %arg0, %c0_i32 : i32, i32
  }
  func.func @transform_1(%arg0: i32) -> (i32, i32) {
    %c0_i32 = arith.constant 0 : i32
    %c0_i32_0 = arith.constant 0 : i32
    return %arg0, %c0_i32 : i32, i32
  }
}

</mosaic_0001>

<llo_original>
// kernel: tpu_custom_call.1
$region0: #{tpu_custom_call.1}
  #allocation0 [shape = 'u32[]', space=smem, size = 0x4, offset = 0x4, fixed_abs, tag = 'smem constant byte address 0x4 - core index']
  #allocation1 [shape = 'u32[144,128]{1,0:T(1,128)}', space=vmem, size = 0x12000, scoped, tag = 'internal scratch']
  %s0 = inlined_call_operand.hbm [shape: f32[2,1024], index: 0, kind: input, shape index: {}]
  %s1 = inlined_call_operand.hbm [shape: f32[2,1024], index: 1, kind: output, shape index: {}]
  %s2 = sld [smem:[#allocation0]]
  $region18: #{tpu_custom_call.1} parent=0
    _
  %s4 = ssub.s32 1, %s2
  %s5 = scalar_select 0, %s4, %s2
  $region1: #{tpu_custom_call.1} parent=0
    #allocation2 [shape = 'u8[32768]{0}', space=vmem, size = 0x8000, scoped, tag = 'input window, operand 0, single buffered']
    #allocation3 [shape = 's32[1]{0}', space=sflag, size = 0x4, scoped, tag = 'scoped memory for tpu_custom_call.1']
    #allocation4 [shape = 's32[1]{0}', space=sflag, size = 0x4, scoped, tag = 'scoped memory for tpu_custom_call.1']
    #allocation5 [shape = 'u8[32768]{0}', space=vmem, size = 0x8000, scoped, tag = 'output window, operand 0, single buffered']
    %6 = vsyncpa [#allocation3], 0
    %7 = vsyncpa [#allocation4], 0
    // Predicated region
    $region2: #{tpu_custom_call.1} parent=1 // pred_check
      _
    $region3: #{tpu_custom_call.1} parent=1 // pred_check_branch
      %9 = sbr.rel (0) target = $region5
    $region4: #{tpu_custom_call.1} parent=1 // pred_region
      %s11 = ssub.s32 1024, 256
      %12 = vsyncadd [#allocation3], %s11
      %s13 = sshll.u32 [#allocation2], 4
      %s14 = int_to_ptr.vmem [resolvable:$true] %s13
      %19 = dma.hbm_to_vmem [thread:$0]  %s0, 256, %s14, [#allocation3], 256, 256, 16
    $region5: #{tpu_custom_call.1} parent=1 // pred_fallthru
      _
    // Predicated region
    $region6: #{tpu_custom_call.1} parent=1 // pred_check
      _
    $region7: #{tpu_custom_call.1} parent=1 // pred_check_branch
      %21 = sbr.rel (0) target = $region9
    $region8: #{tpu_custom_call.1} parent=1 // pred_region
      %22 = dma.done [#allocation3], 1024
    $region9: #{tpu_custom_call.1} parent=1 // pred_fallthru
      _
    %v23 = vld [vmem:[#allocation2] sm:$0xff]
    %v24 = vld [vmem:[#allocation2 + $0x8] sm:$0xff]
    %v25 = vld [vmem:[#allocation2 + $0x10] sm:$0xff]
    %v26 = vld [vmem:[#allocation2 + $0x18] sm:$0xff]
    %v27 = vld [vmem:[#allocation2 + $0x20] sm:$0xff]
    %v28 = vld [vmem:[#allocation2 + $0x28] sm:$0xff]
    %v29 = vld [vmem:[#allocation2 + $0x30] sm:$0xff]
    %v30 = vld [vmem:[#allocation2 + $0x38] sm:$0xff]
    %v31 = vand.u32 2147483647, %v23
    %v32 = vand.u32 2147483647, %v24
    %v33 = vand.u32 2147483647, %v25
    %v34 = vand.u32 2147483647, %v26
    %v35 = vand.u32 2147483647, %v27
    %v36 = vand.u32 2147483647, %v28
    %v37 = vand.u32 2147483647, %v29
    %v38 = vand.u32 2147483647, %v30
    %vm39 = vcmp.gt.f32.partialorder %v31, 2.1474836e+09
    %vm40 = vcmp.gt.f32.partialorder %v32, 2.1474836e+09
    %vm41 = vcmp.gt.f32.partialorder %v33, 2.1474836e+09
    %vm42 = vcmp.gt.f32.partialorder %v34, 2.1474836e+09
    %vm43 = vcmp.gt.f32.partialorder %v35, 2.1474836e+09
    %vm44 = vcmp.gt.f32.partialorder %v36, 2.1474836e+09
    %vm45 = vcmp.gt.f32.partialorder %v37, 2.1474836e+09
    %vm46 = vcmp.gt.f32.partialorder %v38, 2.1474836e+09
    %v47 = vmul.f32 %v31, %v31
    %v48 = vmul.f32 %v32, %v32
    %v49 = vmul.f32 %v33, %v33
    %v50 = vmul.f32 %v34, %v34
    %v51 = vmul.f32 %v35, %v35
    %v52 = vmul.f32 %v36, %v36
    %v53 = vmul.f32 %v37, %v37
    %v54 = vmul.f32 %v38, %v38
    %v55 = vadd.f32 %v47, 1.0
    %v56 = vadd.f32 %v48, 1.0
    %v57 = vadd.f32 %v49, 1.0
    %v58 = vadd.f32 %v50, 1.0
    %v59 = vadd.f32 %v51, 1.0
    %v60 = vadd.f32 %v52, 1.0
    %v61 = vadd.f32 %v53, 1.0
    %v62 = vadd.f32 %v54, 1.0
    %v63 = vrsqrt.pop %v55
    %v64 = vmul.f32 %v55, %v63
    %vm65 = vcmp.eq.f32.partialorder %v55, inf
    %v66 = vsel %vm65, %v55, %v64
    %vm67 = vcmp.eq.f32.partialorder %v55, 0.0
    %v68 = vand.u32 %v55, 2147483648
    %v69 = vsel %vm67, %v68, %v66
    %v70 = vrsqrt.pop %v56
    %v71 = vmul.f32 %v56, %v70
    %vm72 = vcmp.eq.f32.partialorder %v56, inf
    %v73 = vsel %vm72, %v56, %v71
    %vm74 = vcmp.eq.f32.partialorder %v56, 0.0
    %v75 = vand.u32 %v56, 2147483648
    %v76 = vsel %vm74, %v75, %v73
    %v77 = vrsqrt.pop %v57
    %v78 = vmul.f32 %v57, %v77
    %vm79 = vcmp.eq.f32.partialorder %v57, inf
    %v80 = vsel %vm79, %v57, %v78
    %vm81 = vcmp.eq.f32.partialorder %v57, 0.0
    %v82 = vand.u32 %v57, 2147483648
    %v83 = vsel %vm81, %v82, %v80
    %v84 = vrsqrt.pop %v58
    %v85 = vmul.f32 %v58, %v84
    %vm86 = vcmp.eq.f32.partialorder %v58, inf
    %v87 = vsel %vm86, %v58, %v85
    %vm88 = vcmp.eq.f32.partialorder %v58, 0.0
    %v89 = vand.u32 %v58, 2147483648
    %v90 = vsel %vm88, %v89, %v87
    %v91 = vrsqrt.pop %v59
    %v92 = vmul.f32 %v59, %v91
    %vm93 = vcmp.eq.f32.partialorder %v59, inf
    %v94 = vsel %vm93, %v59, %v92
    %vm95 = vcmp.eq.f32.partialorder %v59, 0.0
    %v96 = vand.u32 %v59, 2147483648
    %v97 = vsel %vm95, %v96, %v94
    %v98 = vrsqrt.pop %v60
    %v99 = vmul.f32 %v60, %v98
    %vm100 = vcmp.eq.f32.partialorder %v60, inf
    %v101 = vsel %vm100, %v60, %v99
    %vm102 = vcmp.eq.f32.partialorder %v60, 0.0
    %v103 = vand.u32 %v60, 2147483648
    %v104 = vsel %vm102, %v103, %v101
    %v105 = vrsqrt.pop %v61
    %v106 = vmul.f32 %v61, %v105
    %vm107 = vcmp.eq.f32.partialorder %v61, inf
    %v108 = vsel %vm107, %v61, %v106
    %vm109 = vcmp.eq.f32.partialorder %v61, 0.0
    %v110 = vand.u32 %v61, 2147483648
    %v111 = vsel %vm109, %v110, %v108
    %v112 = vrsqrt.pop %v62
    %v113 = vmul.f32 %v62, %v112
    %vm114 = vcmp.eq.f32.partialorder %v62, inf
    %v115 = vsel %vm114, %v62, %v113
    %vm116 = vcmp.eq.f32.partialorder %v62, 0.0
    %v117 = vand.u32 %v62, 2147483648
    %v118 = vsel %vm116, %v117, %v115
    %v119 = vadd.f32 %v69, 1.0
    %v120 = vadd.f32 %v76, 1.0
    %v121 = vadd.f32 %v83, 1.0
    %v122 = vadd.f32 %v90, 1.0
    %v123 = vadd.f32 %v97, 1.0
    %v124 = vadd.f32 %v104, 1.0
    %v125 = vadd.f32 %v111, 1.0
    %v126 = vadd.f32 %v118, 1.0
    %v127 = vrcp.pop %v119
    %v128 = vrcp.pop %v120
    %v129 = vrcp.pop %v121
    %v130 = vrcp.pop %v122
    %v131 = vrcp.pop %v123
    %v132 = vrcp.pop %v124
    %v133 = vrcp.pop %v125
    %v134 = vrcp.pop %v126
    %v135 = vmul.f32 %v119, %v127
    %v136 = vmul.f32 %v120, %v128
    %v137 = vmul.f32 %v121, %v129
    %v138 = vmul.f32 %v122, %v130
    %v139 = vmul.f32 %v123, %v131
    %v140 = vmul.f32 %v124, %v132
    %v141 = vmul.f32 %v125, %v133
    %v142 = vmul.f32 %v126, %v134
    %v143 = vsub.f32 2.0, %v135
    %v144 = vsub.f32 2.0, %v136
    %v145 = vsub.f32 2.0, %v137
    %v146 = vsub.f32 2.0, %v138
    %v147 = vsub.f32 2.0, %v139
    %v148 = vsub.f32 2.0, %v140
    %v149 = vsub.f32 2.0, %v141
    %v150 = vsub.f32 2.0, %v142
    %v151 = vmul.f32 %v127, %v143
    %v152 = vmul.f32 %v128, %v144
    %v153 = vmul.f32 %v129, %v145
    %v154 = vmul.f32 %v130, %v146
    %v155 = vmul.f32 %v131, %v147
    %v156 = vmul.f32 %v132, %v148
    %v157 = vmul.f32 %v133, %v149
    %v158 = vmul.f32 %v134, %v150
    %v159 = vmul.f32 %v47, %v151
    %v160 = vmul.f32 %v48, %v152
    %v161 = vmul.f32 %v49, %v153
    %v162 = vmul.f32 %v50, %v154
    %v163 = vmul.f32 %v51, %v155
    %v164 = vmul.f32 %v52, %v156
    %v165 = vmul.f32 %v53, %v157
    %v166 = vmul.f32 %v54, %v158
    %v167 = vadd.f32 %v31, %v159
    %v168 = vadd.f32 %v32, %v160
    %v169 = vadd.f32 %v33, %v161
    %v170 = vadd.f32 %v34, %v162
    %v171 = vadd.f32 %v35, %v163
    %v172 = vadd.f32 %v36, %v164
    %v173 = vadd.f32 %v37, %v165
    %v174 = vadd.f32 %v38, %v166
    %v175 = vmul.f32 %v31, 0.5
    %v176 = vmul.f32 %v32, 0.5
    %v177 = vmul.f32 %v33, 0.5
    %v178 = vmul.f32 %v34, 0.5
    %v179 = vmul.f32 %v35, 0.5
    %v180 = vmul.f32 %v36, 0.5
    %v181 = vmul.f32 %v37, 0.5
    %v182 = vmul.f32 %v38, 0.5
    %v183 = vsub.f32 %v175, 1.0
    %v184 = vsub.f32 %v176, 1.0
    %v185 = vsub.f32 %v177, 1.0
    %v186 = vsub.f32 %v178, 1.0
    %v187 = vsub.f32 %v179, 1.0
    %v188 = vsub.f32 %v180, 1.0
    %v189 = vsub.f32 %v181, 1.0
    %v190 = vsub.f32 %v182, 1.0
    %v191 = vsel %vm39, %v183, %v167
    %v192 = vsel %vm40, %v184, %v168
    %v193 = vsel %vm41, %v185, %v169
    %v194 = vsel %vm42, %v186, %v170
    %v195 = vsel %vm43, %v187, %v171
    %v196 = vsel %vm44, %v188, %v172
    %v197 = vsel %vm45, %v189, %v173
    %v198 = vsel %vm46, %v190, %v174
    %v199 = vadd.f32 %v191, 1.0
    %v200 = vlog2.pop %v199
    %v201 = vmul.f32 %v200, 0.6931472
    %v202 = vmul.f32 -0.5, %v191
    %v203 = vadd.f32 %v202, 1.0
    %v204 = vmul.f32 %v203, %v191
    %v205 = vand.u32 2147483647, %v191
    %vm206 = vcmp.lt.f32.partialorder %v205, 0.0004427343
    %v207 = vsel %vm206, %v204, %v201
    %v208 = vadd.f32 %v192, 1.0
    %v209 = vlog2.pop %v208
    %v210 = vmul.f32 %v209, 0.6931472
    %v211 = vmul.f32 -0.5, %v192
    %v212 = vadd.f32 %v211, 1.0
    %v213 = vmul.f32 %v212, %v192
    %v214 = vand.u32 2147483647, %v192
    %vm215 = vcmp.lt.f32.partialorder %v214, 0.0004427343
    %v216 = vsel %vm215, %v213, %v210
    %v217 = vadd.f32 %v193, 1.0
    %v218 = vlog2.pop %v217
    %v219 = vmul.f32 %v218, 0.6931472
    %v220 = vmul.f32 -0.5, %v193
    %v221 = vadd.f32 %v220, 1.0
    %v222 = vmul.f32 %v221, %v193
    %v223 = vand.u32 2147483647, %v193
    %vm224 = vcmp.lt.f32.partialorder %v223, 0.0004427343
    %v225 = vsel %vm224, %v222, %v219
    %v226 = vadd.f32 %v194, 1.0
    %v227 = vlog2.pop %v226
    %v228 = vmul.f32 %v227, 0.6931472
    %v229 = vmul.f32 -0.5, %v194
    %v230 = vadd.f32 %v229, 1.0
    %v231 = vmul.f32 %v230, %v194
    %v232 = vand.u32 2147483647, %v194
    %vm233 = vcmp.lt.f32.partialorder %v232, 0.0004427343
    %v234 = vsel %vm233, %v231, %v228
    %v235 = vadd.f32 %v195, 1.0
    %v236 = vlog2.pop %v235
    %v237 = vmul.f32 %v236, 0.6931472
    %v238 = vmul.f32 -0.5, %v195
    %v239 = vadd.f32 %v238, 1.0
    %v240 = vmul.f32 %v239, %v195
    %v241 = vand.u32 2147483647, %v195
    %vm242 = vcmp.lt.f32.partialorder %v241, 0.0004427343
    %v243 = vsel %vm242, %v240, %v237
    %v244 = vadd.f32 %v196, 1.0
    %v245 = vlog2.pop %v244
    %v246 = vmul.f32 %v245, 0.6931472
    %v247 = vmul.f32 -0.5, %v196
    %v248 = vadd.f32 %v247, 1.0
    %v249 = vmul.f32 %v248, %v196
    %v250 = vand.u32 2147483647, %v196
    %vm251 = vcmp.lt.f32.partialorder %v250, 0.0004427343
    %v252 = vsel %vm251, %v249, %v246
    %v253 = vadd.f32 %v197, 1.0
    %v254 = vlog2.pop %v253
    %v255 = vmul.f32 %v254, 0.6931472
    %v256 = vmul.f32 -0.5, %v197
    %v257 = vadd.f32 %v256, 1.0
    %v258 = vmul.f32 %v257, %v197
    %v259 = vand.u32 2147483647, %v197
    %vm260 = vcmp.lt.f32.partialorder %v259, 0.0004427343
    %v261 = vsel %vm260, %v258, %v255
    %v262 = vadd.f32 %v198, 1.0
    %v263 = vlog2.pop %v262
    %v264 = vmul.f32 %v263, 0.6931472
    %v265 = vmul.f32 -0.5, %v198
    %v266 = vadd.f32 %v265, 1.0
    %v267 = vmul.f32 %v266, %v198
    %v268 = vand.u32 2147483647, %v198
    %vm269 = vcmp.lt.f32.partialorder %v268, 0.0004427343
    %v270 = vsel %vm269, %v267, %v264
    %v271 = vsel %vm39, 1.3862944, 0.0
    %v272 = vsel %vm40, 1.3862944, 0.0
    %v273 = vsel %vm41, 1.3862944, 0.0
    %v274 = vsel %vm42, 1.3862944, 0.0
    %v275 = vsel %vm43, 1.3862944, 0.0
    %v276 = vsel %vm44, 1.3862944, 0.0
    %v277 = vsel %vm45, 1.3862944, 0.0
    %v278 = vsel %vm46, 1.3862944, 0.0
    %v279 = vadd.f32 %v207, %v271
    %v280 = vadd.f32 %v216, %v272
    %v281 = vadd.f32 %v225, %v273
    %v282 = vadd.f32 %v234, %v274
    %v283 = vadd.f32 %v243, %v275
    %v284 = vadd.f32 %v252, %v276
    %v285 = vadd.f32 %v261, %v277
    %v286 = vadd.f32 %v270, %v278
    %v295 = vcombine.low %v23, %v25
    %v296 = vcombine.high %v23, %v25
    %v297 = vcombine.low %v27, %v29
    %v298 = vcombine.high %v27, %v29
    %v300 = vunpack.c.l.s4 1983009808
    %v301 = vunpack.c.0.s8 %v300
    %v302 = vlaneseq
    %v303 = vshrl.u32 %v302, 7
    %v304 = vsub.s32 %v301, %v303
    %v305 = vrot.slane %v295, %v304
    %v307 = vunpack.c.l.s4 1983009808
    %v308 = vunpack.c.0.s8 %v307
    %v309 = vlaneseq
    %v310 = vshrl.u32 %v309, 7
    %v311 = vsub.s32 %v308, %v310
    %v312 = vrot.slane %v296, %v311
    %v314 = vunpack.c.l.s4 1983009808
    %v315 = vunpack.c.0.s8 %v314
    %v316 = vlaneseq
    %v317 = vshrl.u32 %v316, 7
    %v318 = vsub.s32 %v315, %v317
    %v319 = vrot.slane %v297, %v318
    %v321 = vunpack.c.l.s4 1983009808
    %v322 = vunpack.c.0.s8 %v321
    %v323 = vlaneseq
    %v324 = vshrl.u32 %v323, 7
    %v325 = vsub.s32 %v322, %v324
    %v326 = vrot.slane %v298, %v325
    %v327 = vcombine.low %v305, %v319
    %v328 = vcombine.high %v305, %v319
    %v329 = vcombine.low %v312, %v326
    %v330 = vcombine.high %v312, %v326
    %v331 = vcombine.low %v24, %v26
    %v332 = vcombine.high %v24, %v26
    %v333 = vcombine.low %v28, %v30
    %v334 = vcombine.high %v28, %v30
    %v336 = vunpack.c.l.s4 1983009808
    %v337 = vunpack.c.0.s8 %v336
    %v338 = vlaneseq
    %v339 = vshrl.u32 %v338, 7
    %v340 = vsub.s32 %v337, %v339
    %v341 = vrot.slane %v331, %v340
    %v343 = vunpack.c.l.s4 1983009808
    %v344 = vunpack.c.0.s8 %v343
    %v345 = vlaneseq
    %v346 = vshrl.u32 %v345, 7
    %v347 = vsub.s32 %v344, %v346
    %v348 = vrot.slane %v332, %v347
    %v350 = vunpack.c.l.s4 1983009808
    %v351 = vunpack.c.0.s8 %v350
    %v352 = vlaneseq
    %v353 = vshrl.u32 %v352, 7
    %v354 = vsub.s32 %v351, %v353
    %v355 = vrot.slane %v333, %v354
    %v357 = vunpack.c.l.s4 1983009808
    %v358 = vunpack.c.0.s8 %v357
    %v359 = vlaneseq
    %v360 = vshrl.u32 %v359, 7
    %v361 = vsub.s32 %v358, %v360
    %v362 = vrot.slane %v334, %v361
    %v363 = vcombine.low %v341, %v355
    %v364 = vcombine.high %v341, %v355
    %v365 = vcombine.low %v348, %v362
    %v366 = vcombine.high %v348, %v362
    %v367 = vand.u32 %v327, 2147483648
    %v368 = vand.u32 %v328, 2147483648
    %v369 = vand.u32 %v329, 2147483648
    %v370 = vand.u32 %v330, 2147483648
    %v371 = vand.u32 %v363, 2147483648
    %v372 = vand.u32 %v364, 2147483648
    %v373 = vand.u32 %v365, 2147483648
    %v374 = vand.u32 %v366, 2147483648
    %v383 = vcombine.low %v279, %v281
    %v384 = vcombine.high %v279, %v281
    %v385 = vcombine.low %v283, %v285
    %v386 = vcombine.high %v283, %v285
    %v388 = vunpack.c.l.s4 1983009808
    %v389 = vunpack.c.0.s8 %v388
    %v390 = vlaneseq
    %v391 = vshrl.u32 %v390, 7
    %v392 = vsub.s32 %v389, %v391
    %v393 = vrot.slane %v383, %v392
    %v395 = vunpack.c.l.s4 1983009808
    %v396 = vunpack.c.0.s8 %v395
    %v397 = vlaneseq
    %v398 = vshrl.u32 %v397, 7
    %v399 = vsub.s32 %v396, %v398
    %v400 = vrot.slane %v384, %v399
    %v402 = vunpack.c.l.s4 1983009808
    %v403 = vunpack.c.0.s8 %v402
    %v404 = vlaneseq
    %v405 = vshrl.u32 %v404, 7
    %v406 = vsub.s32 %v403, %v405
    %v407 = vrot.slane %v385, %v406
    %v409 = vunpack.c.l.s4 1983009808
    %v410 = vunpack.c.0.s8 %v409
    %v411 = vlaneseq
    %v412 = vshrl.u32 %v411, 7
    %v413 = vsub.s32 %v410, %v412
    %v414 = vrot.slane %v386, %v413
    %v415 = vcombine.low %v393, %v407
    %v416 = vcombine.high %v393, %v407
    %v417 = vcombine.low %v400, %v414
    %v418 = vcombine.high %v400, %v414
    %v419 = vcombine.low %v280, %v282
    %v420 = vcombine.high %v280, %v282
    %v421 = vcombine.low %v284, %v286
    %v422 = vcombine.high %v284, %v286
    %v424 = vunpack.c.l.s4 1983009808
    %v425 = vunpack.c.0.s8 %v424
    %v426 = vlaneseq
    %v427 = vshrl.u32 %v426, 7
    %v428 = vsub.s32 %v425, %v427
    %v429 = vrot.slane %v419, %v428
    %v431 = vunpack.c.l.s4 1983009808
    %v432 = vunpack.c.0.s8 %v431
    %v433 = vlaneseq
    %v434 = vshrl.u32 %v433, 7
    %v435 = vsub.s32 %v432, %v434
    %v436 = vrot.slane %v420, %v435
    %v438 = vunpack.c.l.s4 1983009808
    %v439 = vunpack.c.0.s8 %v438
    %v440 = vlaneseq
    %v441 = vshrl.u32 %v440, 7
    %v442 = vsub.s32 %v439, %v441
    %v443 = vrot.slane %v421, %v442
    %v445 = vunpack.c.l.s4 1983009808
    %v446 = vunpack.c.0.s8 %v445
    %v447 = vlaneseq
    %v448 = vshrl.u32 %v447, 7
    %v449 = vsub.s32 %v446, %v448
    %v450 = vrot.slane %v422, %v449
    %v451 = vcombine.low %v429, %v443
    %v452 = vcombine.high %v429, %v443
    %v453 = vcombine.low %v436, %v450
    %v454 = vcombine.high %v436, %v450
    %v455 = vor.u32 %v415, %v367
    %v456 = vor.u32 %v416, %v368
    %v457 = vor.u32 %v417, %v369
    %v458 = vor.u32 %v418, %v370
    %v459 = vor.u32 %v451, %v371
    %v460 = vor.u32 %v452, %v372
    %v461 = vor.u32 %v453, %v373
    %v462 = vor.u32 %v454, %v374
    %v463 = vcombine.low %v455, %v456
    %v464 = vcombine.high %v455, %v456
    %v465 = vcombine.low %v457, %v458
    %v466 = vcombine.high %v457, %v458
    %v468 = vunpack.c.l.s4 1983009808
    %v469 = vunpack.c.0.s8 %v468
    %v470 = vlaneseq
    %v471 = vshrl.u32 %v470, 7
    %v472 = vsub.s32 %v469, %v471
    %v473 = vrot.slane %v463, %v472
    %v475 = vunpack.c.l.s4 1983009808
    %v476 = vunpack.c.0.s8 %v475
    %v477 = vlaneseq
    %v478 = vshrl.u32 %v477, 7
    %v479 = vsub.s32 %v476, %v478
    %v480 = vrot.slane %v464, %v479
    %v482 = vunpack.c.l.s4 1983009808
    %v483 = vunpack.c.0.s8 %v482
    %v484 = vlaneseq
    %v485 = vshrl.u32 %v484, 7
    %v486 = vsub.s32 %v483, %v485
    %v487 = vrot.slane %v465, %v486
    %v489 = vunpack.c.l.s4 1983009808
    %v490 = vunpack.c.0.s8 %v489
    %v491 = vlaneseq
    %v492 = vshrl.u32 %v491, 7
    %v493 = vsub.s32 %v490, %v492
    %v494 = vrot.slane %v466, %v493
    %v495 = vcombine.low %v473, %v487
    %v496 = vcombine.high %v473, %v487
    %v497 = vcombine.low %v480, %v494
    %v498 = vcombine.high %v480, %v494
    %v499 = vcombine.low %v459, %v460
    %v500 = vcombine.high %v459, %v460
    %v501 = vcombine.low %v461, %v462
    %v502 = vcombine.high %v461, %v462
    %v504 = vunpack.c.l.s4 1983009808
    %v505 = vunpack.c.0.s8 %v504
    %v506 = vlaneseq
    %v507 = vshrl.u32 %v506, 7
    %v508 = vsub.s32 %v505, %v507
    %v509 = vrot.slane %v499, %v508
    %v511 = vunpack.c.l.s4 1983009808
    %v512 = vunpack.c.0.s8 %v511
    %v513 = vlaneseq
    %v514 = vshrl.u32 %v513, 7
    %v515 = vsub.s32 %v512, %v514
    %v516 = vrot.slane %v500, %v515
    %v518 = vunpack.c.l.s4 1983009808
    %v519 = vunpack.c.0.s8 %v518
    %v520 = vlaneseq
    %v521 = vshrl.u32 %v520, 7
    %v522 = vsub.s32 %v519, %v521
    %v523 = vrot.slane %v501, %v522
    %v525 = vunpack.c.l.s4 1983009808
    %v526 = vunpack.c.0.s8 %v525
    %v527 = vlaneseq
    %v528 = vshrl.u32 %v527, 7
    %v529 = vsub.s32 %v526, %v528
    %v530 = vrot.slane %v502, %v529
    %v531 = vcombine.low %v509, %v523
    %v532 = vcombine.high %v509, %v523
    %v533 = vcombine.low %v516, %v530
    %v534 = vcombine.high %v516, %v530
    %543 = vst [vmem:[#allocation5] sm:$0xff] %v495
    %544 = vst [vmem:[#allocation5 + $0x8] sm:$0xff] %v531
    %545 = vst [vmem:[#allocation5 + $0x10] sm:$0xff] %v496
    %546 = vst [vmem:[#allocation5 + $0x18] sm:$0xff] %v532
    %547 = vst [vmem:[#allocation5 + $0x20] sm:$0xff] %v497
    %548 = vst [vmem:[#allocation5 + $0x28] sm:$0xff] %v533
    %549 = vst [vmem:[#allocation5 + $0x30] sm:$0xff] %v498
    %550 = vst [vmem:[#allocation5 + $0x38] sm:$0xff] %v534
    // Predicated region
    $region10: #{tpu_custom_call.1} parent=1 // pred_check
      _
    $region11: #{tpu_custom_call.1} parent=1 // pred_check_branch
      %552 = sbr.rel (0) target = $region13
    $region12: #{tpu_custom_call.1} parent=1 // pred_region
      %s554 = ssub.s32 1024, 256
      %555 = vsyncadd [#allocation4], %s554
      %s556 = sshll.u32 [#allocation5], 4
      %s557 = int_to_ptr.vmem [resolvable:$true] %s556
      %562 = dma.vmem_to_hbm [thread:$0]  %s557, 256, %s1, [#allocation4], 256, 256, 16
    $region13: #{tpu_custom_call.1} parent=1 // pred_fallthru
      _
    // Predicated region
    $region14: #{tpu_custom_call.1} parent=1 // pred_check
      _
    $region15: #{tpu_custom_call.1} parent=1 // pred_check_branch
      %564 = sbr.rel (0) target = $region17
    $region16: #{tpu_custom_call.1} parent=1 // pred_region
      %565 = dma.done [#allocation4], 1024
    $region17: #{tpu_custom_call.1} parent=1 // pred_fallthru
      _
    %566 = vsyncpa [#allocation3], 1
    %567 = vsyncpa [#allocation4], 1

</llo_original>
